<compile_context>
chip_gen: v5e
topology: v5e:2x2
jax: 0.10.0
libtpu: 0.0.40
codegen_flags: <defaults>
</compile_context>

<pallas_src>
import math

import jax
import jax.numpy as jnp
from jax import lax
from jax.experimental import pallas as pl
from jax.experimental.pallas import tpu as pltpu

_LANE = 128
_SUBLANE = 8


def _round_up(x: int, m: int) -> int:
    return ((x + m - 1) // m) * m


def _cdiv(a: int, b: int) -> int:
    return (a + b - 1) // b


def _tile_bytes(rows: int, cols: int, itemsize: int = 4) -> int:
    """Conservative VMEM footprint of a 2-D array (sublane/lane padded)."""
    return _round_up(max(rows, 1), _SUBLANE) * _round_up(max(cols, 1), _LANE) * itemsize


def _make_critic_kernel(num_hidden: int, compute_dtype):
    """Kernel: `num_hidden` tanh hidden layers + linear value head."""

    def kernel(*refs):
        # refs layout: s tile, (W_i, b_i) * L, wv, bv, out
        x_ref = refs[0]
        hidden_refs = refs[1:1 + 2 * num_hidden]
        wv_ref = refs[1 + 2 * num_hidden]
        bv_ref = refs[2 + 2 * num_hidden]
        o_ref = refs[3 + 2 * num_hidden]

        x = x_ref[...]                      # (tm, d_in), batch-major as stored in HBM
        if x.dtype != compute_dtype:
            x = x.astype(compute_dtype)

        # First hidden layer: contract the shared d_in (last dim of both W and
        # the s tile).  Mosaic folds the W @ s^T orientation into the MXU, so
        # there is no host-side or in-kernel transpose; the result lands with
        # batch on the lane dim.  f32 accumulation; bias add + tanh stay f32.
        w0 = hidden_refs[0][...]            # (d0, d_in)
        b0 = hidden_refs[1][...]            # (d0, 1)
        h = jnp.tanh(
            lax.dot_general(w0, x, (((1,), (1,)), ((), ())),
                            preferred_element_type=jnp.float32) + b0)

        for li in range(1, num_hidden):
            w = hidden_refs[2 * li][...]        # (d_out, d_prev)
            b = hidden_refs[2 * li + 1][...]    # (d_out, 1)
            h_in = h if h.dtype == compute_dtype else h.astype(compute_dtype)
            h = jnp.tanh(jnp.dot(w, h_in, preferred_element_type=jnp.float32) + b)

        # Value head (d_last -> 1): VPU multiply + sublane (XLU) reduce rather
        # than a degenerate N=1 MXU matmul.  Result is lane-dense (1, tm).
        # Each output lane depends only on its own input row, so any garbage
        # in the ragged last tile stays in lanes that are discarded on store.
        v = jnp.sum(h * wv_ref[...], axis=0, keepdims=True) + bv_ref[...]
        o_ref[...] = v.astype(o_ref.dtype)

    return kernel


def prepare_critic_params(hidden_params, value_params, compute_dtype=jnp.float32):
    """One-time weight prep (dtype cast + bias reshape), kept out of the per-call path."""
    prepped = []
    for w, b in hidden_params:
        prepped.append((jnp.asarray(w, compute_dtype),
                        jnp.asarray(b, jnp.float32).reshape(w.shape[0], 1)))
    wv, bv = value_params
    wv = jnp.asarray(wv, jnp.float32).reshape(-1, 1)
    bv = jnp.asarray(bv, jnp.float32).reshape(1, 1)
    return prepped, (wv, bv)


def critic_forward(s, hidden_params, value_params, *, block_batch=512,
                   compute_dtype=jnp.float32, input_buffering=None):
    """Critic forward pass in a single batch-tiled Pallas kernel.

    Args:
      s: (batch, input_dim) float32 (read batch-major, no host transpose/pad).
      hidden_params: list of (W, b), W (d_out, d_in) [PyTorch layout], b (d_out,)/(d_out,1).
      value_params: (wv, bv) with wv (d_last, 1)/(d_last,), bv (1, 1)/scalar.
      block_batch: requested batch tile (rounded to a multiple of 128).
      compute_dtype: MXU operand dtype (f32 default; bf16 for full-rate MXU).
      input_buffering: optional buffer depth for the moving s tile (e.g. 3 on
        v6e if the bundle dump shows exposed DMA waits).
    Returns:
      (batch, 1) float32 value estimates.
    """
    batch, input_dim = s.shape
    num_hidden = len(hidden_params)
    assert num_hidden >= 1, "Critic needs at least one hidden layer"

    # Normalize params (no-ops if prepare_critic_params was already used).
    hid = []
    for w, b in hidden_params:
        w = w if w.dtype == compute_dtype else w.astype(compute_dtype)
        b = jnp.asarray(b, jnp.float32).reshape(w.shape[0], 1)
        hid.append((w, b))
    wv, bv = value_params
    wv = jnp.asarray(wv, jnp.float32).reshape(-1, 1)
    bv = jnp.asarray(bv, jnp.float32).reshape(1, 1)
    dims = [w.shape[0] for w, _ in hid]
    w_itemsize = jnp.dtype(compute_dtype).itemsize

    # Generation-aware VMEM budget (v5e 16 MiB scoped default, v7x 64 MiB physical).
    try:
        vmem_cap = int(pltpu.get_tpu_info().vmem_capacity_bytes)
    except Exception:
        vmem_cap = 64 << 20            # v7x has the smallest physical VMEM
    budget = int(vmem_cap * 0.7)       # headroom for compiler-internal scratch

    def vmem_needed(tm, weight_buffers):
        in_bufs = input_buffering if input_buffering is not None else 2
        need = _tile_bytes(tm, input_dim) * in_bufs              # s tile(s), f32
        d_prev, act = input_dim, 0
        for d_out in dims:
            need += _tile_bytes(d_out, d_prev, w_itemsize) * weight_buffers
            need += _tile_bytes(d_out, 1) * weight_buffers       # bias pads to 128 lanes
            act = max(act, _tile_bytes(d_out, tm))
            d_prev = d_out
        need += (_tile_bytes(d_prev, 1) + _tile_bytes(1, 1)) * weight_buffers
        need += 2 * act                                          # live activations
        need += _tile_bytes(1, tm) * 2                           # output tile
        return need

    # Batch tile: big (fills the 256-wide MXU N dim and amortizes the ~0.35us
    # per-grid-step overhead), but >= 2 grid steps for large batches so both
    # v7x TensorCores get work, and small enough to fit the VMEM budget.
    if batch <= _LANE:
        tm = batch                                           # single full-extent tile
    else:
        tm = _round_up(min(block_batch, batch), _LANE)
        tm = min(tm, _round_up(_cdiv(batch, 2), _LANE))      # >= 2 grid steps (v7x)
        tm = max(tm, _LANE)
        while tm > _LANE and vmem_needed(tm, 2) > budget:    # e.g. v5e with huge d_in
            tm = max(_LANE, _round_up(tm // 2, _LANE))
    grid = (_cdiv(batch, tm),)

    # Flat inputs + cost estimate.
    flat_inputs = [s]
    flops, transcend = 0, 0
    d_prev = input_dim
    for (w, b) in hid:
        flat_inputs.extend([w, b])
        flops += 2 * batch * d_prev * w.shape[0]
        transcend += batch * w.shape[0]
        d_prev = w.shape[0]
    flat_inputs.extend([wv, bv])
    flops += 2 * batch * d_prev
    bytes_accessed = sum(int(a.size) * a.dtype.itemsize for a in flat_inputs) + batch * 4

    kernel = _make_critic_kernel(num_hidden, compute_dtype)
    out_shape = jax.ShapeDtypeStruct((1, batch), jnp.float32)

    def build(optimized):
        in_kw, res_kw, comp_kw = {}, {}, dict(dimension_semantics=("parallel",))
        if optimized:
            if input_buffering is not None:
                in_kw = dict(pipeline_mode=pl.Buffered(input_buffering))
            # Constant-index weights don't need double buffers (v7x VMEM headroom).
            res_kw = dict(pipeline_mode=pl.Buffered(1))
            limit = max(2 * vmem_needed(tm, 1) + (4 << 20), 32 << 20)
            comp_kw["vmem_limit_bytes"] = int(min(limit, budget))

        in_specs = [pl.BlockSpec((tm, input_dim), lambda i: (i, 0), **in_kw)]
        for (w, b) in hid:
            # Constant index_map -> DMA'd once, VMEM-resident across grid steps.
            in_specs.append(pl.BlockSpec(w.shape, lambda i: (0, 0), **res_kw))
            in_specs.append(pl.BlockSpec(b.shape, lambda i: (0, 0), **res_kw))
        in_specs.append(pl.BlockSpec(wv.shape, lambda i: (0, 0), **res_kw))
        in_specs.append(pl.BlockSpec(bv.shape, lambda i: (0, 0), **res_kw))
        out_spec = pl.BlockSpec((1, tm), lambda i: (0, i))

        return pl.pallas_call(
            kernel,
            out_shape=out_shape,
            grid=grid,
            in_specs=in_specs,
            out_specs=out_spec,
            compiler_params=pltpu.CompilerParams(**comp_kw),
            cost_estimate=pl.CostEstimate(
                flops=flops, transcendentals=transcend,
                bytes_accessed=bytes_accessed),
        )

    try:
        out = build(True)(*flat_inputs)
    except Exception:
        # Fallback for Pallas builds that reject pipeline_mode / explicit VMEM
        # limit: default pipelining (correct, still no host transpose of s).
        out = build(False)(*flat_inputs)

    return out.reshape(batch, 1)   # (1, batch) -> PyTorch-shaped (batch, 1)


def init_critic_params(key, input_dim, hidden_layers=(128,)):
    """PyTorch-style uniform fan-in init, PyTorch weight layout (out, in)."""
    hidden_params = []
    d_in = input_dim
    for d_out in hidden_layers:
        key, kw, kb = jax.random.split(key, 3)
        bound = 1.0 / math.sqrt(d_in)
        w = jax.random.uniform(kw, (d_out, d_in), jnp.float32, -bound, bound)
        b = jax.random.uniform(kb, (d_out, 1), jnp.float32, -bound, bound)
        hidden_params.append((w, b))
        d_in = d_out
    key, kw, kb = jax.random.split(key, 3)
    bound = 1.0 / math.sqrt(d_in)
    wv = jax.random.uniform(kw, (d_in, 1), jnp.float32, -bound, bound)
    bv = jax.random.uniform(kb, (1, 1), jnp.float32, -bound, bound)
    return hidden_params, (wv, bv)


def critic_reference(s, hidden_params, value_params):
    """Pure-JAX reference for correctness checking."""
    h = s
    for w, b in hidden_params:           # w (d_out, d_in), b (d_out, 1)
        h = jnp.tanh(h @ w.T + b.T)
    wv, bv = value_params                # wv (d_last, 1), bv (1, 1)
    return h @ wv + bv


if __name__ == "__main__":
    key = jax.random.PRNGKey(0)
    batch, input_dim = 8, 32
    hidden_layers = (128,)

    key, k_s, k_p = jax.random.split(key, 3)
    s = jax.random.normal(k_s, (batch, input_dim), jnp.float32)
    hidden_params, value_params = init_critic_params(k_p, input_dim, hidden_layers)

    # One-time weight prep outside the per-call path.  For full-rate MXU on
    # v5e/v6e/v7x, pass compute_dtype=jnp.bfloat16 here and below (and widen
    # the tolerance accordingly); f32 keeps the tight 1e-4 check.
    hid_p, val_p = prepare_critic_params(hidden_params, value_params,
                                         compute_dtype=jnp.float32)

    out = critic_forward(s, hid_p, val_p, compute_dtype=jnp.float32)
    jax.block_until_ready(out)

    ref = critic_reference(s, hidden_params, value_params)
    assert out.shape == (batch, 1)
    assert jnp.allclose(out, ref, atol=1e-4, rtol=1e-4), "mismatch vs reference"

    print("KERNEL_OK")
</pallas_src>

<mosaic_0001>
module attributes {stable_mosaic.version = 11 : i64} {
  func.func @kernel(%arg0: i32, %arg1: memref<8x32xf32, #tpu.memory_space<vmem>>, %arg2: memref<128x32xf32, #tpu.memory_space<vmem>>, %arg3: memref<128x1xf32, #tpu.memory_space<vmem>>, %arg4: memref<128x1xf32, #tpu.memory_space<vmem>>, %arg5: memref<1x1xf32, #tpu.memory_space<vmem>>, %arg6: memref<1x8xf32, #tpu.memory_space<vmem>>) attributes {dimension_semantics = [#tpu.dimension_semantics<parallel>], iteration_bounds = array<i64: 1>, scalar_prefetch = 0 : i64, scratch_operands = 0 : i64, tpu.core_type = #tpu.core_type<tc>, window_params = [{transform_indices = @transform_0, window_bounds = array<i64: 8, 32>}, {pipeline_mode = #tpu.pipeline_mode<synchronous>, transform_indices = @transform_1, window_bounds = array<i64: 128, 32>}, {pipeline_mode = #tpu.pipeline_mode<synchronous>, transform_indices = @transform_2, window_bounds = array<i64: 128, 1>}, {pipeline_mode = #tpu.pipeline_mode<synchronous>, transform_indices = @transform_3, window_bounds = array<i64: 128, 1>}, {pipeline_mode = #tpu.pipeline_mode<synchronous>, transform_indices = @transform_4, window_bounds = array<i64: 1, 1>}, {transform_indices = @transform_5, window_bounds = array<i64: 1, 8>}]} {
    %c0 = arith.constant 0 : index
    %c0_0 = arith.constant 0 : index
    %0 = vector.load %arg1[%c0, %c0_0] : memref<8x32xf32, #tpu.memory_space<vmem>>, vector<8x32xf32>
    %c0_1 = arith.constant 0 : index
    %c0_2 = arith.constant 0 : index
    %1 = vector.load %arg2[%c0_1, %c0_2] : memref<128x32xf32, #tpu.memory_space<vmem>>, vector<128x32xf32>
    %c0_3 = arith.constant 0 : index
    %c0_4 = arith.constant 0 : index
    %2 = vector.load %arg3[%c0_3, %c0_4] : memref<128x1xf32, #tpu.memory_space<vmem>>, vector<128x1xf32>
    %cst = arith.constant dense<0.000000e+00> : vector<128x8xf32>
    %3 = tpu.matmul %1, %0, %cst {dimension_numbers = #tpu.dot_dimension_numbers<[1], [1], [0], [0], [0, 0, 1, 0], [], []>} : vector<128x32xf32>, vector<8x32xf32>, vector<128x8xf32> -> vector<128x8xf32>
    %4 = vector.broadcast %2 : vector<128x1xf32> to vector<128x8xf32>
    %5 = arith.addf %3, %4 : vector<128x8xf32>
    %6 = math.tanh %5 : vector<128x8xf32>
    %c0_5 = arith.constant 0 : index
    %c0_6 = arith.constant 0 : index
    %7 = vector.load %arg4[%c0_5, %c0_6] : memref<128x1xf32, #tpu.memory_space<vmem>>, vector<128x1xf32>
    %8 = vector.broadcast %7 : vector<128x1xf32> to vector<128x8xf32>
    %9 = arith.mulf %6, %8 : vector<128x8xf32>
    %cst_7 = arith.constant dense<0.000000e+00> : vector<8xf32>
    %10 = vector.multi_reduction <add>, %9, %cst_7 [0] : vector<128x8xf32> to vector<8xf32>
    %11 = vector.shape_cast %10 : vector<8xf32> to vector<1x8xf32>
    %c0_8 = arith.constant 0 : index
    %c0_9 = arith.constant 0 : index
    %12 = vector.load %arg5[%c0_8, %c0_9] : memref<1x1xf32, #tpu.memory_space<vmem>>, vector<1x1xf32>
    %13 = vector.broadcast %12 : vector<1x1xf32> to vector<1x8xf32>
    %14 = arith.addf %11, %13 : vector<1x8xf32>
    %c0_10 = arith.constant 0 : index
    %c0_11 = arith.constant 0 : index
    %15 = vector.load %arg6[%c0_10, %c0_11] : memref<1x8xf32, #tpu.memory_space<vmem>>, vector<1x8xf32>
    tpu.vector_store %arg6[%c0_10, %c0_11], %14 {strides = array<i32>} : memref<1x8xf32, #tpu.memory_space<vmem>>, vector<1x8xf32>,
    return
  }
  func.func @transform_0(%arg0: i32) -> (i32, i32) {
    %c0_i32 = arith.constant 0 : i32
    %c0_i32_0 = arith.constant 0 : i32
    return %arg0, %c0_i32 : i32, i32
  }
  func.func @transform_1(%arg0: i32) -> (i32, i32) {
    %c0_i32 = arith.constant 0 : i32
    %c0_i32_0 = arith.constant 0 : i32
    %c0_i32_1 = arith.constant 0 : i32
    return %c0_i32, %c0_i32_0 : i32, i32
  }
  func.func @transform_2(%arg0: i32) -> (i32, i32) {
    %c0_i32 = arith.constant 0 : i32
    %c0_i32_0 = arith.constant 0 : i32
    %c0_i32_1 = arith.constant 0 : i32
    return %c0_i32, %c0_i32_0 : i32, i32
  }
  func.func @transform_3(%arg0: i32) -> (i32, i32) {
    %c0_i32 = arith.constant 0 : i32
    %c0_i32_0 = arith.constant 0 : i32
    %c0_i32_1 = arith.constant 0 : i32
    return %c0_i32, %c0_i32_0 : i32, i32
  }
  func.func @transform_4(%arg0: i32) -> (i32, i32) {
    %c0_i32 = arith.constant 0 : i32
    %c0_i32_0 = arith.constant 0 : i32
    %c0_i32_1 = arith.constant 0 : i32
    return %c0_i32, %c0_i32_0 : i32, i32
  }
  func.func @transform_5(%arg0: i32) -> (i32, i32) {
    %c0_i32 = arith.constant 0 : i32
    %c0_i32_0 = arith.constant 0 : i32
    return %c0_i32, %arg0 : i32, i32
  }
}

module attributes {stable_mosaic.version = 11 : i64} {
  func.func @kernel(%arg0: i32, %arg1: memref<8x32xf32, #tpu.memory_space<vmem>>, %arg2: memref<128x32xf32, #tpu.memory_space<vmem>>, %arg3: memref<128x1xf32, #tpu.memory_space<vmem>>, %arg4: memref<128x1xf32, #tpu.memory_space<vmem>>, %arg5: memref<1x1xf32, #tpu.memory_space<vmem>>, %arg6: memref<1x8xf32, #tpu.memory_space<vmem>>) attributes {dimension_semantics = [#tpu.dimension_semantics<parallel>], iteration_bounds = array<i64: 1>, scalar_prefetch = 0 : i64, scratch_operands = 0 : i64, tpu.core_type = #tpu.core_type<tc>, window_params = [{transform_indices = @transform_0, window_bounds = array<i64: 8, 32>}, {pipeline_mode = #tpu.pipeline_mode<synchronous>, transform_indices = @transform_1, window_bounds = array<i64: 128, 32>}, {pipeline_mode = #tpu.pipeline_mode<synchronous>, transform_indices = @transform_2, window_bounds = array<i64: 128, 1>}, {pipeline_mode = #tpu.pipeline_mode<synchronous>, transform_indices = @transform_3, window_bounds = array<i64: 128, 1>}, {pipeline_mode = #tpu.pipeline_mode<synchronous>, transform_indices = @transform_4, window_bounds = array<i64: 1, 1>}, {transform_indices = @transform_5, window_bounds = array<i64: 1, 8>}]} {
    %c0 = arith.constant 0 : index
    %c0_0 = arith.constant 0 : index
    %0 = vector.load %arg1[%c0, %c0_0] : memref<8x32xf32, #tpu.memory_space<vmem>>, vector<8x32xf32>
    %c0_1 = arith.constant 0 : index
    %c0_2 = arith.constant 0 : index
    %1 = vector.load %arg2[%c0_1, %c0_2] : memref<128x32xf32, #tpu.memory_space<vmem>>, vector<128x32xf32>
    %c0_3 = arith.constant 0 : index
    %c0_4 = arith.constant 0 : index
    %2 = vector.load %arg3[%c0_3, %c0_4] : memref<128x1xf32, #tpu.memory_space<vmem>>, vector<128x1xf32>
    %cst = arith.constant dense<0.000000e+00> : vector<128x8xf32>
    %3 = tpu.matmul %1, %0, %cst {dimension_numbers = #tpu.dot_dimension_numbers<[1], [1], [0], [0], [0, 0, 1, 0], [], []>} : vector<128x32xf32>, vector<8x32xf32>, vector<128x8xf32> -> vector<128x8xf32>
    %4 = vector.broadcast %2 : vector<128x1xf32> to vector<128x8xf32>
    %5 = arith.addf %3, %4 : vector<128x8xf32>
    %6 = math.tanh %5 : vector<128x8xf32>
    %c0_5 = arith.constant 0 : index
    %c0_6 = arith.constant 0 : index
    %7 = vector.load %arg4[%c0_5, %c0_6] : memref<128x1xf32, #tpu.memory_space<vmem>>, vector<128x1xf32>
    %8 = vector.broadcast %7 : vector<128x1xf32> to vector<128x8xf32>
    %9 = arith.mulf %6, %8 : vector<128x8xf32>
    %cst_7 = arith.constant dense<0.000000e+00> : vector<8xf32>
    %10 = vector.multi_reduction <add>, %9, %cst_7 [0] : vector<128x8xf32> to vector<8xf32>
    %11 = vector.shape_cast %10 : vector<8xf32> to vector<1x8xf32>
    %c0_8 = arith.constant 0 : index
    %c0_9 = arith.constant 0 : index
    %12 = vector.load %arg5[%c0_8, %c0_9] : memref<1x1xf32, #tpu.memory_space<vmem>>, vector<1x1xf32>
    %13 = vector.broadcast %12 : vector<1x1xf32> to vector<1x8xf32>
    %14 = arith.addf %11, %13 : vector<1x8xf32>
    %c0_10 = arith.constant 0 : index
    %c0_11 = arith.constant 0 : index
    %15 = vector.load %arg6[%c0_10, %c0_11] : memref<1x8xf32, #tpu.memory_space<vmem>>, vector<1x8xf32>
    tpu.vector_store %arg6[%c0_10, %c0_11], %14 {strides = array<i32>} : memref<1x8xf32, #tpu.memory_space<vmem>>, vector<1x8xf32>,
    return
  }
  func.func @transform_0(%arg0: i32) -> (i32, i32) {
    %c0_i32 = arith.constant 0 : i32
    %c0_i32_0 = arith.constant 0 : i32
    return %arg0, %c0_i32 : i32, i32
  }
  func.func @transform_1(%arg0: i32) -> (i32, i32) {
    %c0_i32 = arith.constant 0 : i32
    %c0_i32_0 = arith.constant 0 : i32
    %c0_i32_1 = arith.constant 0 : i32
    return %c0_i32, %c0_i32_0 : i32, i32
  }
  func.func @transform_2(%arg0: i32) -> (i32, i32) {
    %c0_i32 = arith.constant 0 : i32
    %c0_i32_0 = arith.constant 0 : i32
    %c0_i32_1 = arith.constant 0 : i32
    return %c0_i32, %c0_i32_0 : i32, i32
  }
  func.func @transform_3(%arg0: i32) -> (i32, i32) {
    %c0_i32 = arith.constant 0 : i32
    %c0_i32_0 = arith.constant 0 : i32
    %c0_i32_1 = arith.constant 0 : i32
    return %c0_i32, %c0_i32_0 : i32, i32
  }
  func.func @transform_4(%arg0: i32) -> (i32, i32) {
    %c0_i32 = arith.constant 0 : i32
    %c0_i32_0 = arith.constant 0 : i32
    %c0_i32_1 = arith.constant 0 : i32
    return %c0_i32, %c0_i32_0 : i32, i32
  }
  func.func @transform_5(%arg0: i32) -> (i32, i32) {
    %c0_i32 = arith.constant 0 : i32
    %c0_i32_0 = arith.constant 0 : i32
    return %c0_i32, %arg0 : i32, i32
  }
}

</mosaic_0001>

<llo_original>
// kernel: tpu_custom_call.1
$region0: #{tpu_custom_call.1}
  #allocation0 [shape = 'u32[]', space=smem, size = 0x4, offset = 0x4, fixed_abs, tag = 'smem constant byte address 0x4 - core index']
  #allocation1 [shape = 'u32[72,128]{1,0:T(1,128)}', space=vmem, size = 0x9000, scoped, tag = 'internal scratch']
  #allocation2 [shape = 'f32[1,1]{1,0:T(1,128)S(1)}', space=vmem, size = 0x200, scoped, tag = 'scoped memory for tpu_custom_call.1']
  %s0 = inlined_call_operand.vmem [shape: f32[8,32], index: 0, kind: input, shape index: {}]
  %s1 = inlined_call_operand.vmem [shape: f32[128,32], index: 1, kind: input, shape index: {}]
  %s2 = inlined_call_operand.vmem [shape: f32[128,1], index: 2, kind: input, shape index: {}]
  %s3 = inlined_call_operand.vmem [shape: f32[128,1], index: 3, kind: input, shape index: {}]
  %s4 = inlined_call_operand.<no memory space> [shape: f32[1,1], index: 4, kind: input, shape index: {}]
  %s5 = inlined_call_operand.hbm [shape: f32[1,8], index: 5, kind: output, shape index: {}]
  %s6 = sld [smem:[#allocation0]]
  $region30: #{tpu_custom_call.1} parent=0
    _
  %s8 = ssub.s32 1, %s6
  %s9 = scalar_select 0, %s8, %s6
  %v10 = vstv %s4
  %11 = vst [vmem:[#allocation2] sm:$0x1] %v10
  $region1: #{tpu_custom_call.1} parent=0
    #allocation3 [shape = 'u8[512]{0}', space=vmem, size = 0x400, scoped, tag = 'output window, operand 0, single buffered']
    #allocation4 [shape = 's32[1]{0}', space=sflag, size = 0x4, scoped, tag = 'scoped memory for tpu_custom_call.1']
    %12 = vsyncpa [#allocation4], 0
    // Predicated region
    $region2: #{tpu_custom_call.1} parent=1 // pred_check
      _
    $region3: #{tpu_custom_call.1} parent=1 // pred_check_branch
      %14 = sbr.rel (0) target = $region5
    $region4: #{tpu_custom_call.1} parent=1 // pred_region
      _
    $region5: #{tpu_custom_call.1} parent=1 // pred_fallthru
      _
    // Predicated region
    $region6: #{tpu_custom_call.1} parent=1 // pred_check
      _
    $region7: #{tpu_custom_call.1} parent=1 // pred_check_branch
      %16 = sbr.rel (0) target = $region9
    $region8: #{tpu_custom_call.1} parent=1 // pred_region
      _
    $region9: #{tpu_custom_call.1} parent=1 // pred_fallthru
      _
    // Predicated region
    $region10: #{tpu_custom_call.1} parent=1 // pred_check
      _
    $region11: #{tpu_custom_call.1} parent=1 // pred_check_branch
      %18 = sbr.rel (0) target = $region13
    $region12: #{tpu_custom_call.1} parent=1 // pred_region
      _
    $region13: #{tpu_custom_call.1} parent=1 // pred_fallthru
      _
    // Predicated region
    $region14: #{tpu_custom_call.1} parent=1 // pred_check
      _
    $region15: #{tpu_custom_call.1} parent=1 // pred_check_branch
      %20 = sbr.rel (0) target = $region17
    $region16: #{tpu_custom_call.1} parent=1 // pred_region
      _
    $region17: #{tpu_custom_call.1} parent=1 // pred_fallthru
      _
    // Predicated region
    $region18: #{tpu_custom_call.1} parent=1 // pred_check
      _
    $region19: #{tpu_custom_call.1} parent=1 // pred_check_branch
      %22 = sbr.rel (0) target = $region21
    $region20: #{tpu_custom_call.1} parent=1 // pred_region
      _
    $region21: #{tpu_custom_call.1} parent=1 // pred_fallthru
      _
    %v23 = vld [vmem:[%s0] sm:$0xff]
    %v24 = vld [vmem:[%s1] sm:$0xff]
    %v25 = vld [vmem:[%s1 + $0x8] sm:$0xff]
    %v26 = vld [vmem:[%s1 + $0x10] sm:$0xff]
    %v27 = vld [vmem:[%s1 + $0x18] sm:$0xff]
    %v28 = vld [vmem:[%s1 + $0x20] sm:$0xff]
    %v29 = vld [vmem:[%s1 + $0x28] sm:$0xff]
    %v30 = vld [vmem:[%s1 + $0x30] sm:$0xff]
    %v31 = vld [vmem:[%s1 + $0x38] sm:$0xff]
    %v32 = vld [vmem:[%s1 + $0x40] sm:$0xff]
    %v33 = vld [vmem:[%s1 + $0x48] sm:$0xff]
    %v34 = vld [vmem:[%s1 + $0x50] sm:$0xff]
    %v35 = vld [vmem:[%s1 + $0x58] sm:$0xff]
    %v36 = vld [vmem:[%s1 + $0x60] sm:$0xff]
    %v37 = vld [vmem:[%s1 + $0x68] sm:$0xff]
    %v38 = vld [vmem:[%s1 + $0x70] sm:$0xff]
    %v39 = vld [vmem:[%s1 + $0x78] sm:$0xff]
    %v40 = vld [vmem:[%s2] sm:$0xff]
    %v41 = vld [vmem:[%s2 + $0x8] sm:$0xff]
    %v42 = vld [vmem:[%s2 + $0x10] sm:$0xff]
    %v43 = vld [vmem:[%s2 + $0x18] sm:$0xff]
    %v44 = vld [vmem:[%s2 + $0x20] sm:$0xff]
    %v45 = vld [vmem:[%s2 + $0x28] sm:$0xff]
    %v46 = vld [vmem:[%s2 + $0x30] sm:$0xff]
    %v47 = vld [vmem:[%s2 + $0x38] sm:$0xff]
    %v48 = vld [vmem:[%s2 + $0x40] sm:$0xff]
    %v49 = vld [vmem:[%s2 + $0x48] sm:$0xff]
    %v50 = vld [vmem:[%s2 + $0x50] sm:$0xff]
    %v51 = vld [vmem:[%s2 + $0x58] sm:$0xff]
    %v52 = vld [vmem:[%s2 + $0x60] sm:$0xff]
    %v53 = vld [vmem:[%s2 + $0x68] sm:$0xff]
    %v54 = vld [vmem:[%s2 + $0x70] sm:$0xff]
    %v55 = vld [vmem:[%s2 + $0x78] sm:$0xff]
    %57 = vset.pattern.permute.xlu0 0
    %58 = vperm.xlu0 %57, %v40
    %v59 = vpop.permute.xlu0 %58
    %62 = vset.pattern.permute.xlu0 0
    %63 = vperm.xlu0 %62, %v41
    %v64 = vpop.permute.xlu0 %63
    %67 = vset.pattern.permute.xlu0 0
    %68 = vperm.xlu0 %67, %v42
    %v69 = vpop.permute.xlu0 %68
    %72 = vset.pattern.permute.xlu0 0
    %73 = vperm.xlu0 %72, %v43
    %v74 = vpop.permute.xlu0 %73
    %77 = vset.pattern.permute.xlu0 0
    %78 = vperm.xlu0 %77, %v44
    %v79 = vpop.permute.xlu0 %78
    %82 = vset.pattern.permute.xlu0 0
    %83 = vperm.xlu0 %82, %v45
    %v84 = vpop.permute.xlu0 %83
    %87 = vset.pattern.permute.xlu0 0
    %88 = vperm.xlu0 %87, %v46
    %v89 = vpop.permute.xlu0 %88
    %92 = vset.pattern.permute.xlu0 0
    %93 = vperm.xlu0 %92, %v47
    %v94 = vpop.permute.xlu0 %93
    %97 = vset.pattern.permute.xlu0 0
    %98 = vperm.xlu0 %97, %v48
    %v99 = vpop.permute.xlu0 %98
    %102 = vset.pattern.permute.xlu0 0
    %103 = vperm.xlu0 %102, %v49
    %v104 = vpop.permute.xlu0 %103
    %107 = vset.pattern.permute.xlu0 0
    %108 = vperm.xlu0 %107, %v50
    %v109 = vpop.permute.xlu0 %108
    %112 = vset.pattern.permute.xlu0 0
    %113 = vperm.xlu0 %112, %v51
    %v114 = vpop.permute.xlu0 %113
    %117 = vset.pattern.permute.xlu0 0
    %118 = vperm.xlu0 %117, %v52
    %v119 = vpop.permute.xlu0 %118
    %122 = vset.pattern.permute.xlu0 0
    %123 = vperm.xlu0 %122, %v53
    %v124 = vpop.permute.xlu0 %123
    %127 = vset.pattern.permute.xlu0 0
    %128 = vperm.xlu0 %127, %v54
    %v129 = vpop.permute.xlu0 %128
    %132 = vset.pattern.permute.xlu0 0
    %133 = vperm.xlu0 %132, %v55
    %v134 = vpop.permute.xlu0 %133
    %vm136 = vcmask 261120
    %v138 = vsel %vm136, %v24, 0
    %v141 = vsel %vm136, %v25, 0
    %v144 = vsel %vm136, %v26, 0
    %v147 = vsel %vm136, %v27, 0
    %v150 = vsel %vm136, %v28, 0
    %v153 = vsel %vm136, %v29, 0
    %v156 = vsel %vm136, %v30, 0
    %v159 = vsel %vm136, %v31, 0
    %v162 = vsel %vm136, %v32, 0
    %v165 = vsel %vm136, %v33, 0
    %v168 = vsel %vm136, %v34, 0
    %v171 = vsel %vm136, %v35, 0
    %v174 = vsel %vm136, %v36, 0
    %v177 = vsel %vm136, %v37, 0
    %v180 = vsel %vm136, %v38, 0
    %v183 = vsel %vm136, %v39, 0
    %v186 = vsel %vm136, %v23, 0
    %188 = vmatpush.xpose.msra.mxu0 0.0
    %189 = vmatpush.xpose.msra.mxu0 0.0
    %190 = vmatpush.xpose.msra.mxu0 0.0
    %191 = vmatpush.xpose.msra.mxu0 0.0
    %192 = vmatpush.xpose.msra.mxu0 0.0
    %193 = vmatpush.xpose.msra.mxu0 0.0
    %194 = vmatpush.xpose.msra.mxu0 0.0
    %195 = vmatpush.xpose.msra.mxu0 0.0
    %196 = vmatpush.xpose.msra.mxu0 0.0
    %197 = vmatpush.xpose.msra.mxu0 0.0
    %198 = vmatpush.xpose.msra.mxu0 0.0
    %199 = vmatpush.xpose.msra.mxu0 0.0
    %200 = vmatpush.xpose.msra.mxu0 0.0
    %201 = vmatpush.xpose.msra.mxu0 0.0
    %202 = vmatpush.xpose.msra.mxu0 0.0
    %203 = vmatpush.xpose.msra.mxu0 %v186
    %204 = vmatmul.f32.gmra.mxu0 %v138
    %v205 = vpop.f32.mrf.mxu0
    %v206 = vadd.f32 %v59, %v205
    %207 = vmatmul.f32.gmra.mxu0 %v141
    %v208 = vpop.f32.mrf.mxu0
    %v209 = vadd.f32 %v64, %v208
    %210 = vmatmul.f32.gmra.mxu0 %v144
    %v211 = vpop.f32.mrf.mxu0
    %v212 = vadd.f32 %v69, %v211
    %213 = vmatmul.f32.gmra.mxu0 %v147
    %v214 = vpop.f32.mrf.mxu0
    %v215 = vadd.f32 %v74, %v214
    %216 = vmatmul.f32.gmra.mxu0 %v150
    %v217 = vpop.f32.mrf.mxu0
    %v218 = vadd.f32 %v79, %v217
    %219 = vmatmul.f32.gmra.mxu0 %v153
    %v220 = vpop.f32.mrf.mxu0
    %v221 = vadd.f32 %v84, %v220
    %222 = vmatmul.f32.gmra.mxu0 %v156
    %v223 = vpop.f32.mrf.mxu0
    %v224 = vadd.f32 %v89, %v223
    %225 = vmatmul.f32.gmra.mxu0 %v159
    %v226 = vpop.f32.mrf.mxu0
    %v227 = vadd.f32 %v94, %v226
    %228 = vmatmul.f32.gmra.mxu0 %v162
    %v229 = vpop.f32.mrf.mxu0
    %v230 = vadd.f32 %v99, %v229
    %231 = vmatmul.f32.gmra.mxu0 %v165
    %v232 = vpop.f32.mrf.mxu0
    %v233 = vadd.f32 %v104, %v232
    %234 = vmatmul.f32.gmra.mxu0 %v168
    %v235 = vpop.f32.mrf.mxu0
    %v236 = vadd.f32 %v109, %v235
    %237 = vmatmul.f32.gmra.mxu0 %v171
    %v238 = vpop.f32.mrf.mxu0
    %v239 = vadd.f32 %v114, %v238
    %240 = vmatmul.f32.gmra.mxu0 %v174
    %v241 = vpop.f32.mrf.mxu0
    %v242 = vadd.f32 %v119, %v241
    %243 = vmatmul.f32.gmra.mxu0 %v177
    %v244 = vpop.f32.mrf.mxu0
    %v245 = vadd.f32 %v124, %v244
    %246 = vmatmul.f32.gmra.mxu0 %v180
    %v247 = vpop.f32.mrf.mxu0
    %v248 = vadd.f32 %v129, %v247
    %249 = vmatmul.f32.gmra.mxu0 %v183
    %v250 = vpop.f32.mrf.mxu0
    %v251 = vadd.f32 %v134, %v250
    %252 = vdwg.mxu0
    %v253 = vtanh.pop %v206
    %v254 = vtanh.pop %v209
    %v255 = vtanh.pop %v212
    %v256 = vtanh.pop %v215
    %v257 = vtanh.pop %v218
    %v258 = vtanh.pop %v221
    %v259 = vtanh.pop %v224
    %v260 = vtanh.pop %v227
    %v261 = vtanh.pop %v230
    %v262 = vtanh.pop %v233
    %v263 = vtanh.pop %v236
    %v264 = vtanh.pop %v239
    %v265 = vtanh.pop %v242
    %v266 = vtanh.pop %v245
    %v267 = vtanh.pop %v248
    %v268 = vtanh.pop %v251
    %v269 = vld [vmem:[%s3] sm:$0xff]
    %v270 = vld [vmem:[%s3 + $0x8] sm:$0xff]
    %v271 = vld [vmem:[%s3 + $0x10] sm:$0xff]
    %v272 = vld [vmem:[%s3 + $0x18] sm:$0xff]
    %v273 = vld [vmem:[%s3 + $0x20] sm:$0xff]
    %v274 = vld [vmem:[%s3 + $0x28] sm:$0xff]
    %v275 = vld [vmem:[%s3 + $0x30] sm:$0xff]
    %v276 = vld [vmem:[%s3 + $0x38] sm:$0xff]
    %v277 = vld [vmem:[%s3 + $0x40] sm:$0xff]
    %v278 = vld [vmem:[%s3 + $0x48] sm:$0xff]
    %v279 = vld [vmem:[%s3 + $0x50] sm:$0xff]
    %v280 = vld [vmem:[%s3 + $0x58] sm:$0xff]
    %v281 = vld [vmem:[%s3 + $0x60] sm:$0xff]
    %v282 = vld [vmem:[%s3 + $0x68] sm:$0xff]
    %v283 = vld [vmem:[%s3 + $0x70] sm:$0xff]
    %v284 = vld [vmem:[%s3 + $0x78] sm:$0xff]
    %286 = vset.pattern.permute.xlu0 0
    %287 = vperm.xlu0 %286, %v269
    %v288 = vpop.permute.xlu0 %287
    %291 = vset.pattern.permute.xlu0 0
    %292 = vperm.xlu0 %291, %v270
    %v293 = vpop.permute.xlu0 %292
    %296 = vset.pattern.permute.xlu0 0
    %297 = vperm.xlu0 %296, %v271
    %v298 = vpop.permute.xlu0 %297
    %301 = vset.pattern.permute.xlu0 0
    %302 = vperm.xlu0 %301, %v272
    %v303 = vpop.permute.xlu0 %302
    %306 = vset.pattern.permute.xlu0 0
    %307 = vperm.xlu0 %306, %v273
    %v308 = vpop.permute.xlu0 %307
    %311 = vset.pattern.permute.xlu0 0
    %312 = vperm.xlu0 %311, %v274
    %v313 = vpop.permute.xlu0 %312
    %316 = vset.pattern.permute.xlu0 0
    %317 = vperm.xlu0 %316, %v275
    %v318 = vpop.permute.xlu0 %317
    %321 = vset.pattern.permute.xlu0 0
    %322 = vperm.xlu0 %321, %v276
    %v323 = vpop.permute.xlu0 %322
    %326 = vset.pattern.permute.xlu0 0
    %327 = vperm.xlu0 %326, %v277
    %v328 = vpop.permute.xlu0 %327
    %331 = vset.pattern.permute.xlu0 0
    %332 = vperm.xlu0 %331, %v278
    %v333 = vpop.permute.xlu0 %332
    %336 = vset.pattern.permute.xlu0 0
    %337 = vperm.xlu0 %336, %v279
    %v338 = vpop.permute.xlu0 %337
    %341 = vset.pattern.permute.xlu0 0
    %342 = vperm.xlu0 %341, %v280
    %v343 = vpop.permute.xlu0 %342
    %346 = vset.pattern.permute.xlu0 0
    %347 = vperm.xlu0 %346, %v281
    %v348 = vpop.permute.xlu0 %347
    %351 = vset.pattern.permute.xlu0 0
    %352 = vperm.xlu0 %351, %v282
    %v353 = vpop.permute.xlu0 %352
    %356 = vset.pattern.permute.xlu0 0
    %357 = vperm.xlu0 %356, %v283
    %v358 = vpop.permute.xlu0 %357
    %361 = vset.pattern.permute.xlu0 0
    %362 = vperm.xlu0 %361, %v284
    %v363 = vpop.permute.xlu0 %362
    %v365 = vmul.f32 %v253, %v288
    %v366 = vmul.f32 %v254, %v293
    %v367 = vmul.f32 %v255, %v298
    %v368 = vmul.f32 %v256, %v303
    %v369 = vmul.f32 %v257, %v308
    %v370 = vmul.f32 %v258, %v313
    %v371 = vmul.f32 %v259, %v318
    %v372 = vmul.f32 %v260, %v323
    %v373 = vmul.f32 %v261, %v328
    %v374 = vmul.f32 %v262, %v333
    %v375 = vmul.f32 %v263, %v338
    %v376 = vmul.f32 %v264, %v343
    %v377 = vmul.f32 %v265, %v348
    %v378 = vmul.f32 %v266, %v353
    %v379 = vmul.f32 %v267, %v358
    %v380 = vmul.f32 %v268, %v363
    %vm381 = vcmask 64512
    %v382 = vsel %vm381, %v365, 0.0
    %v383 = vsel %vm381, %v366, 0.0
    %v384 = vadd.f32 %v382, %v383
    %v385 = vsel %vm381, %v367, 0.0
    %v386 = vadd.f32 %v384, %v385
    %v387 = vsel %vm381, %v368, 0.0
    %v388 = vadd.f32 %v386, %v387
    %v389 = vsel %vm381, %v369, 0.0
    %v390 = vadd.f32 %v388, %v389
    %v391 = vsel %vm381, %v370, 0.0
    %v392 = vadd.f32 %v390, %v391
    %v393 = vsel %vm381, %v371, 0.0
    %v394 = vadd.f32 %v392, %v393
    %v395 = vsel %vm381, %v372, 0.0
    %v396 = vadd.f32 %v394, %v395
    %v397 = vsel %vm381, %v373, 0.0
    %v398 = vadd.f32 %v396, %v397
    %v399 = vsel %vm381, %v374, 0.0
    %v400 = vadd.f32 %v398, %v399
    %v401 = vsel %vm381, %v375, 0.0
    %v402 = vadd.f32 %v400, %v401
    %v403 = vsel %vm381, %v376, 0.0
    %v404 = vadd.f32 %v402, %v403
    %v405 = vsel %vm381, %v377, 0.0
    %v406 = vadd.f32 %v404, %v405
    %v407 = vsel %vm381, %v378, 0.0
    %v408 = vadd.f32 %v406, %v407
    %v409 = vsel %vm381, %v379, 0.0
    %v410 = vadd.f32 %v408, %v409
    %v411 = vsel %vm381, %v380, 0.0
    %v412 = vadd.f32 %v410, %v411
    %v413 = vrot.slane %v412, 4
    %v414 = vadd.f32 %v412, %v413
    %v415 = vrot.slane %v414, 2
    %v416 = vadd.f32 %v414, %v415
    %v417 = vrot.slane %v416, 1
    %v418 = vadd.f32 %v416, %v417
    %v419 = vld [vmem:[#allocation2] sm:$0x1]
    %421 = vset.pattern.permute.xlu0 0
    %422 = vperm.xlu0 %421, %v419
    %v423 = vpop.permute.xlu0 %422
    %v425 = vperm.slane %v423, 0
    %v426 = vadd.f32 %v418, %v425
    %vm427 = vcmask 57344
    %428 = vst.msk [vmem:[#allocation3] sm:$0x1] %vm427, %v426
    // Predicated region
    $region22: #{tpu_custom_call.1} parent=1 // pred_check
      _
    $region23: #{tpu_custom_call.1} parent=1 // pred_check_branch
      %430 = sbr.rel (0) target = $region25
    $region24: #{tpu_custom_call.1} parent=1 // pred_region
      %432 = vsyncadd [#allocation4], 0
      %s434 = sshll.u32 [#allocation3], 4
      %s435 = int_to_ptr.vmem [resolvable:$true] %s434
      %s436 = sshll.u32 %s5, 4
      %s437 = int_to_ptr.hbm [resolvable:$true] %s436
      %439 = dma.vmem_to_hbm [thread:$0]  %s435, 16, %s437, [#allocation4]
    $region25: #{tpu_custom_call.1} parent=1 // pred_fallthru
      _
    // Predicated region
    $region26: #{tpu_custom_call.1} parent=1 // pred_check
      _
    $region27: #{tpu_custom_call.1} parent=1 // pred_check_branch
      %441 = sbr.rel (0) target = $region29
    $region28: #{tpu_custom_call.1} parent=1 // pred_region
      %443 = dma.done [#allocation4], 16
    $region29: #{tpu_custom_call.1} parent=1 // pred_fallthru
      _
    %444 = vsyncpa [#allocation4], 1

// kernel: tpu_custom_call.1
$region0: #{tpu_custom_call.1}
  #allocation0 [shape = 'u32[]', space=smem, size = 0x4, offset = 0x4, fixed_abs, tag = 'smem constant byte address 0x4 - core index']
  #allocation1 [shape = 'u32[72,128]{1,0:T(1,128)}', space=vmem, size = 0x9000, scoped, tag = 'internal scratch']
  #allocation2 [shape = 'f32[1,1]{1,0:T(1,128)S(1)}', space=vmem, size = 0x200, scoped, tag = 'scoped memory for tpu_custom_call.1']
  %s0 = inlined_call_operand.vmem [shape: f32[8,32], index: 0, kind: input, shape index: {}]
  %s1 = inlined_call_operand.vmem [shape: f32[128,32], index: 1, kind: input, shape index: {}]
  %s2 = inlined_call_operand.vmem [shape: f32[128,1], index: 2, kind: input, shape index: {}]
  %s3 = inlined_call_operand.vmem [shape: f32[128,1], index: 3, kind: input, shape index: {}]
  %s4 = inlined_call_operand.<no memory space> [shape: f32[1,1], index: 4, kind: input, shape index: {}]
  %s5 = inlined_call_operand.hbm [shape: f32[1,8], index: 5, kind: output, shape index: {}]
  %s6 = sld [smem:[#allocation0]]
  $region30: #{tpu_custom_call.1} parent=0
    _
  %s8 = ssub.s32 1, %s6
  %s9 = scalar_select 0, %s8, %s6
  %v10 = vstv %s4
  %11 = vst [vmem:[#allocation2] sm:$0x1] %v10
  $region1: #{tpu_custom_call.1} parent=0
    #allocation3 [shape = 'u8[512]{0}', space=vmem, size = 0x400, scoped, tag = 'output window, operand 0, single buffered']
    #allocation4 [shape = 's32[1]{0}', space=sflag, size = 0x4, scoped, tag = 'scoped memory for tpu_custom_call.1']
    %12 = vsyncpa [#allocation4], 0
    // Predicated region
    $region2: #{tpu_custom_call.1} parent=1 // pred_check
      _
    $region3: #{tpu_custom_call.1} parent=1 // pred_check_branch
      %14 = sbr.rel (0) target = $region5
    $region4: #{tpu_custom_call.1} parent=1 // pred_region
      _
    $region5: #{tpu_custom_call.1} parent=1 // pred_fallthru
      _
    // Predicated region
    $region6: #{tpu_custom_call.1} parent=1 // pred_check
      _
    $region7: #{tpu_custom_call.1} parent=1 // pred_check_branch
      %16 = sbr.rel (0) target = $region9
    $region8: #{tpu_custom_call.1} parent=1 // pred_region
      _
    $region9: #{tpu_custom_call.1} parent=1 // pred_fallthru
      _
    // Predicated region
    $region10: #{tpu_custom_call.1} parent=1 // pred_check
      _
    $region11: #{tpu_custom_call.1} parent=1 // pred_check_branch
      %18 = sbr.rel (0) target = $region13
    $region12: #{tpu_custom_call.1} parent=1 // pred_region
      _
    $region13: #{tpu_custom_call.1} parent=1 // pred_fallthru
      _
    // Predicated region
    $region14: #{tpu_custom_call.1} parent=1 // pred_check
      _
    $region15: #{tpu_custom_call.1} parent=1 // pred_check_branch
      %20 = sbr.rel (0) target = $region17
    $region16: #{tpu_custom_call.1} parent=1 // pred_region
      _
    $region17: #{tpu_custom_call.1} parent=1 // pred_fallthru
      _
    // Predicated region
    $region18: #{tpu_custom_call.1} parent=1 // pred_check
      _
    $region19: #{tpu_custom_call.1} parent=1 // pred_check_branch
      %22 = sbr.rel (0) target = $region21
    $region20: #{tpu_custom_call.1} parent=1 // pred_region
      _
    $region21: #{tpu_custom_call.1} parent=1 // pred_fallthru
      _
    %v23 = vld [vmem:[%s0] sm:$0xff]
    %v24 = vld [vmem:[%s1] sm:$0xff]
    %v25 = vld [vmem:[%s1 + $0x8] sm:$0xff]
    %v26 = vld [vmem:[%s1 + $0x10] sm:$0xff]
    %v27 = vld [vmem:[%s1 + $0x18] sm:$0xff]
    %v28 = vld [vmem:[%s1 + $0x20] sm:$0xff]
    %v29 = vld [vmem:[%s1 + $0x28] sm:$0xff]
    %v30 = vld [vmem:[%s1 + $0x30] sm:$0xff]
    %v31 = vld [vmem:[%s1 + $0x38] sm:$0xff]
    %v32 = vld [vmem:[%s1 + $0x40] sm:$0xff]
    %v33 = vld [vmem:[%s1 + $0x48] sm:$0xff]
    %v34 = vld [vmem:[%s1 + $0x50] sm:$0xff]
    %v35 = vld [vmem:[%s1 + $0x58] sm:$0xff]
    %v36 = vld [vmem:[%s1 + $0x60] sm:$0xff]
    %v37 = vld [vmem:[%s1 + $0x68] sm:$0xff]
    %v38 = vld [vmem:[%s1 + $0x70] sm:$0xff]
    %v39 = vld [vmem:[%s1 + $0x78] sm:$0xff]
    %v40 = vld [vmem:[%s2] sm:$0xff]
    %v41 = vld [vmem:[%s2 + $0x8] sm:$0xff]
    %v42 = vld [vmem:[%s2 + $0x10] sm:$0xff]
    %v43 = vld [vmem:[%s2 + $0x18] sm:$0xff]
    %v44 = vld [vmem:[%s2 + $0x20] sm:$0xff]
    %v45 = vld [vmem:[%s2 + $0x28] sm:$0xff]
    %v46 = vld [vmem:[%s2 + $0x30] sm:$0xff]
    %v47 = vld [vmem:[%s2 + $0x38] sm:$0xff]
    %v48 = vld [vmem:[%s2 + $0x40] sm:$0xff]
    %v49 = vld [vmem:[%s2 + $0x48] sm:$0xff]
    %v50 = vld [vmem:[%s2 + $0x50] sm:$0xff]
    %v51 = vld [vmem:[%s2 + $0x58] sm:$0xff]
    %v52 = vld [vmem:[%s2 + $0x60] sm:$0xff]
    %v53 = vld [vmem:[%s2 + $0x68] sm:$0xff]
    %v54 = vld [vmem:[%s2 + $0x70] sm:$0xff]
    %v55 = vld [vmem:[%s2 + $0x78] sm:$0xff]
    %57 = vset.pattern.permute.xlu0 0
    %58 = vperm.xlu0 %57, %v40
    %v59 = vpop.permute.xlu0 %58
    %62 = vset.pattern.permute.xlu0 0
    %63 = vperm.xlu0 %62, %v41
    %v64 = vpop.permute.xlu0 %63
    %67 = vset.pattern.permute.xlu0 0
    %68 = vperm.xlu0 %67, %v42
    %v69 = vpop.permute.xlu0 %68
    %72 = vset.pattern.permute.xlu0 0
    %73 = vperm.xlu0 %72, %v43
    %v74 = vpop.permute.xlu0 %73
    %77 = vset.pattern.permute.xlu0 0
    %78 = vperm.xlu0 %77, %v44
    %v79 = vpop.permute.xlu0 %78
    %82 = vset.pattern.permute.xlu0 0
    %83 = vperm.xlu0 %82, %v45
    %v84 = vpop.permute.xlu0 %83
    %87 = vset.pattern.permute.xlu0 0
    %88 = vperm.xlu0 %87, %v46
    %v89 = vpop.permute.xlu0 %88
    %92 = vset.pattern.permute.xlu0 0
    %93 = vperm.xlu0 %92, %v47
    %v94 = vpop.permute.xlu0 %93
    %97 = vset.pattern.permute.xlu0 0
    %98 = vperm.xlu0 %97, %v48
    %v99 = vpop.permute.xlu0 %98
    %102 = vset.pattern.permute.xlu0 0
    %103 = vperm.xlu0 %102, %v49
    %v104 = vpop.permute.xlu0 %103
    %107 = vset.pattern.permute.xlu0 0
    %108 = vperm.xlu0 %107, %v50
    %v109 = vpop.permute.xlu0 %108
    %112 = vset.pattern.permute.xlu0 0
    %113 = vperm.xlu0 %112, %v51
    %v114 = vpop.permute.xlu0 %113
    %117 = vset.pattern.permute.xlu0 0
    %118 = vperm.xlu0 %117, %v52
    %v119 = vpop.permute.xlu0 %118
    %122 = vset.pattern.permute.xlu0 0
    %123 = vperm.xlu0 %122, %v53
    %v124 = vpop.permute.xlu0 %123
    %127 = vset.pattern.permute.xlu0 0
    %128 = vperm.xlu0 %127, %v54
    %v129 = vpop.permute.xlu0 %128
    %132 = vset.pattern.permute.xlu0 0
    %133 = vperm.xlu0 %132, %v55
    %v134 = vpop.permute.xlu0 %133
    %vm136 = vcmask 261120
    %v138 = vsel %vm136, %v24, 0
    %v141 = vsel %vm136, %v25, 0
    %v144 = vsel %vm136, %v26, 0
    %v147 = vsel %vm136, %v27, 0
    %v150 = vsel %vm136, %v28, 0
    %v153 = vsel %vm136, %v29, 0
    %v156 = vsel %vm136, %v30, 0
    %v159 = vsel %vm136, %v31, 0
    %v162 = vsel %vm136, %v32, 0
    %v165 = vsel %vm136, %v33, 0
    %v168 = vsel %vm136, %v34, 0
    %v171 = vsel %vm136, %v35, 0
    %v174 = vsel %vm136, %v36, 0
    %v177 = vsel %vm136, %v37, 0
    %v180 = vsel %vm136, %v38, 0
    %v183 = vsel %vm136, %v39, 0
    %v186 = vsel %vm136, %v23, 0
    %188 = vmatpush.xpose.msra.mxu0 0.0
    %189 = vmatpush.xpose.msra.mxu0 0.0
    %190 = vmatpush.xpose.msra.mxu0 0.0
    %191 = vmatpush.xpose.msra.mxu0 0.0
    %192 = vmatpush.xpose.msra.mxu0 0.0
    %193 = vmatpush.xpose.msra.mxu0 0.0
    %194 = vmatpush.xpose.msra.mxu0 0.0
    %195 = vmatpush.xpose.msra.mxu0 0.0
    %196 = vmatpush.xpose.msra.mxu0 0.0
    %197 = vmatpush.xpose.msra.mxu0 0.0
    %198 = vmatpush.xpose.msra.mxu0 0.0
    %199 = vmatpush.xpose.msra.mxu0 0.0
    %200 = vmatpush.xpose.msra.mxu0 0.0
    %201 = vmatpush.xpose.msra.mxu0 0.0
    %202 = vmatpush.xpose.msra.mxu0 0.0
    %203 = vmatpush.xpose.msra.mxu0 %v186
    %204 = vmatmul.f32.gmra.mxu0 %v138
    %v205 = vpop.f32.mrf.mxu0
    %v206 = vadd.f32 %v59, %v205
    %207 = vmatmul.f32.gmra.mxu0 %v141
    %v208 = vpop.f32.mrf.mxu0
    %v209 = vadd.f32 %v64, %v208
    %210 = vmatmul.f32.gmra.mxu0 %v144
    %v211 = vpop.f32.mrf.mxu0
    %v212 = vadd.f32 %v69, %v211
    %213 = vmatmul.f32.gmra.mxu0 %v147
    %v214 = vpop.f32.mrf.mxu0
    %v215 = vadd.f32 %v74, %v214
    %216 = vmatmul.f32.gmra.mxu0 %v150
    %v217 = vpop.f32.mrf.mxu0
    %v218 = vadd.f32 %v79, %v217
    %219 = vmatmul.f32.gmra.mxu0 %v153
    %v220 = vpop.f32.mrf.mxu0
    %v221 = vadd.f32 %v84, %v220
    %222 = vmatmul.f32.gmra.mxu0 %v156
    %v223 = vpop.f32.mrf.mxu0
    %v224 = vadd.f32 %v89, %v223
    %225 = vmatmul.f32.gmra.mxu0 %v159
    %v226 = vpop.f32.mrf.mxu0
    %v227 = vadd.f32 %v94, %v226
    %228 = vmatmul.f32.gmra.mxu0 %v162
    %v229 = vpop.f32.mrf.mxu0
    %v230 = vadd.f32 %v99, %v229
    %231 = vmatmul.f32.gmra.mxu0 %v165
    %v232 = vpop.f32.mrf.mxu0
    %v233 = vadd.f32 %v104, %v232
    %234 = vmatmul.f32.gmra.mxu0 %v168
    %v235 = vpop.f32.mrf.mxu0
    %v236 = vadd.f32 %v109, %v235
    %237 = vmatmul.f32.gmra.mxu0 %v171
    %v238 = vpop.f32.mrf.mxu0
    %v239 = vadd.f32 %v114, %v238
    %240 = vmatmul.f32.gmra.mxu0 %v174
    %v241 = vpop.f32.mrf.mxu0
    %v242 = vadd.f32 %v119, %v241
    %243 = vmatmul.f32.gmra.mxu0 %v177
    %v244 = vpop.f32.mrf.mxu0
    %v245 = vadd.f32 %v124, %v244
    %246 = vmatmul.f32.gmra.mxu0 %v180
    %v247 = vpop.f32.mrf.mxu0
    %v248 = vadd.f32 %v129, %v247
    %249 = vmatmul.f32.gmra.mxu0 %v183
    %v250 = vpop.f32.mrf.mxu0
    %v251 = vadd.f32 %v134, %v250
    %252 = vdwg.mxu0
    %v253 = vtanh.pop %v206
    %v254 = vtanh.pop %v209
    %v255 = vtanh.pop %v212
    %v256 = vtanh.pop %v215
    %v257 = vtanh.pop %v218
    %v258 = vtanh.pop %v221
    %v259 = vtanh.pop %v224
    %v260 = vtanh.pop %v227
    %v261 = vtanh.pop %v230
    %v262 = vtanh.pop %v233
    %v263 = vtanh.pop %v236
    %v264 = vtanh.pop %v239
    %v265 = vtanh.pop %v242
    %v266 = vtanh.pop %v245
    %v267 = vtanh.pop %v248
    %v268 = vtanh.pop %v251
    %v269 = vld [vmem:[%s3] sm:$0xff]
    %v270 = vld [vmem:[%s3 + $0x8] sm:$0xff]
    %v271 = vld [vmem:[%s3 + $0x10] sm:$0xff]
    %v272 = vld [vmem:[%s3 + $0x18] sm:$0xff]
    %v273 = vld [vmem:[%s3 + $0x20] sm:$0xff]
    %v274 = vld [vmem:[%s3 + $0x28] sm:$0xff]
    %v275 = vld [vmem:[%s3 + $0x30] sm:$0xff]
    %v276 = vld [vmem:[%s3 + $0x38] sm:$0xff]
    %v277 = vld [vmem:[%s3 + $0x40] sm:$0xff]
    %v278 = vld [vmem:[%s3 + $0x48] sm:$0xff]
    %v279 = vld [vmem:[%s3 + $0x50] sm:$0xff]
    %v280 = vld [vmem:[%s3 + $0x58] sm:$0xff]
    %v281 = vld [vmem:[%s3 + $0x60] sm:$0xff]
    %v282 = vld [vmem:[%s3 + $0x68] sm:$0xff]
    %v283 = vld [vmem:[%s3 + $0x70] sm:$0xff]
    %v284 = vld [vmem:[%s3 + $0x78] sm:$0xff]
    %286 = vset.pattern.permute.xlu0 0
    %287 = vperm.xlu0 %286, %v269
    %v288 = vpop.permute.xlu0 %287
    %291 = vset.pattern.permute.xlu0 0
    %292 = vperm.xlu0 %291, %v270
    %v293 = vpop.permute.xlu0 %292
    %296 = vset.pattern.permute.xlu0 0
    %297 = vperm.xlu0 %296, %v271
    %v298 = vpop.permute.xlu0 %297
    %301 = vset.pattern.permute.xlu0 0
    %302 = vperm.xlu0 %301, %v272
    %v303 = vpop.permute.xlu0 %302
    %306 = vset.pattern.permute.xlu0 0
    %307 = vperm.xlu0 %306, %v273
    %v308 = vpop.permute.xlu0 %307
    %311 = vset.pattern.permute.xlu0 0
    %312 = vperm.xlu0 %311, %v274
    %v313 = vpop.permute.xlu0 %312
    %316 = vset.pattern.permute.xlu0 0
    %317 = vperm.xlu0 %316, %v275
    %v318 = vpop.permute.xlu0 %317
    %321 = vset.pattern.permute.xlu0 0
    %322 = vperm.xlu0 %321, %v276
    %v323 = vpop.permute.xlu0 %322
    %326 = vset.pattern.permute.xlu0 0
    %327 = vperm.xlu0 %326, %v277
    %v328 = vpop.permute.xlu0 %327
    %331 = vset.pattern.permute.xlu0 0
    %332 = vperm.xlu0 %331, %v278
    %v333 = vpop.permute.xlu0 %332
    %336 = vset.pattern.permute.xlu0 0
    %337 = vperm.xlu0 %336, %v279
    %v338 = vpop.permute.xlu0 %337
    %341 = vset.pattern.permute.xlu0 0
    %342 = vperm.xlu0 %341, %v280
    %v343 = vpop.permute.xlu0 %342
    %346 = vset.pattern.permute.xlu0 0
    %347 = vperm.xlu0 %346, %v281
    %v348 = vpop.permute.xlu0 %347
    %351 = vset.pattern.permute.xlu0 0
    %352 = vperm.xlu0 %351, %v282
    %v353 = vpop.permute.xlu0 %352
    %356 = vset.pattern.permute.xlu0 0
    %357 = vperm.xlu0 %356, %v283
    %v358 = vpop.permute.xlu0 %357
    %361 = vset.pattern.permute.xlu0 0
    %362 = vperm.xlu0 %361, %v284
    %v363 = vpop.permute.xlu0 %362
    %v365 = vmul.f32 %v253, %v288
    %v366 = vmul.f32 %v254, %v293
    %v367 = vmul.f32 %v255, %v298
    %v368 = vmul.f32 %v256, %v303
    %v369 = vmul.f32 %v257, %v308
    %v370 = vmul.f32 %v258, %v313
    %v371 = vmul.f32 %v259, %v318
    %v372 = vmul.f32 %v260, %v323
    %v373 = vmul.f32 %v261, %v328
    %v374 = vmul.f32 %v262, %v333
    %v375 = vmul.f32 %v263, %v338
    %v376 = vmul.f32 %v264, %v343
    %v377 = vmul.f32 %v265, %v348
    %v378 = vmul.f32 %v266, %v353
    %v379 = vmul.f32 %v267, %v358
    %v380 = vmul.f32 %v268, %v363
    %vm381 = vcmask 64512
    %v382 = vsel %vm381, %v365, 0.0
    %v383 = vsel %vm381, %v366, 0.0
    %v384 = vadd.f32 %v382, %v383
    %v385 = vsel %vm381, %v367, 0.0
    %v386 = vadd.f32 %v384, %v385
    %v387 = vsel %vm381, %v368, 0.0
    %v388 = vadd.f32 %v386, %v387
    %v389 = vsel %vm381, %v369, 0.0
    %v390 = vadd.f32 %v388, %v389
    %v391 = vsel %vm381, %v370, 0.0
    %v392 = vadd.f32 %v390, %v391
    %v393 = vsel %vm381, %v371, 0.0
    %v394 = vadd.f32 %v392, %v393
    %v395 = vsel %vm381, %v372, 0.0
    %v396 = vadd.f32 %v394, %v395
    %v397 = vsel %vm381, %v373, 0.0
    %v398 = vadd.f32 %v396, %v397
    %v399 = vsel %vm381, %v374, 0.0
    %v400 = vadd.f32 %v398, %v399
    %v401 = vsel %vm381, %v375, 0.0
    %v402 = vadd.f32 %v400, %v401
    %v403 = vsel %vm381, %v376, 0.0
    %v404 = vadd.f32 %v402, %v403
    %v405 = vsel %vm381, %v377, 0.0
    %v406 = vadd.f32 %v404, %v405
    %v407 = vsel %vm381, %v378, 0.0
    %v408 = vadd.f32 %v406, %v407
    %v409 = vsel %vm381, %v379, 0.0
    %v410 = vadd.f32 %v408, %v409
    %v411 = vsel %vm381, %v380, 0.0
    %v412 = vadd.f32 %v410, %v411
    %v413 = vrot.slane %v412, 4
    %v414 = vadd.f32 %v412, %v413
    %v415 = vrot.slane %v414, 2
    %v416 = vadd.f32 %v414, %v415
    %v417 = vrot.slane %v416, 1
    %v418 = vadd.f32 %v416, %v417
    %v419 = vld [vmem:[#allocation2] sm:$0x1]
    %421 = vset.pattern.permute.xlu0 0
    %422 = vperm.xlu0 %421, %v419
    %v423 = vpop.permute.xlu0 %422
    %v425 = vperm.slane %v423, 0
    %v426 = vadd.f32 %v418, %v425
    %vm427 = vcmask 57344
    %428 = vst.msk [vmem:[#allocation3] sm:$0x1] %vm427, %v426
    // Predicated region
    $region22: #{tpu_custom_call.1} parent=1 // pred_check
      _
    $region23: #{tpu_custom_call.1} parent=1 // pred_check_branch
      %430 = sbr.rel (0) target = $region25
    $region24: #{tpu_custom_call.1} parent=1 // pred_region
      %432 = vsyncadd [#allocation4], 0
      %s434 = sshll.u32 [#allocation3], 4
      %s435 = int_to_ptr.vmem [resolvable:$true] %s434
      %s436 = sshll.u32 %s5, 4
      %s437 = int_to_ptr.hbm [resolvable:$true] %s436
      %439 = dma.vmem_to_hbm [thread:$0]  %s435, 16, %s437, [#allocation4]
    $region25: #{tpu_custom_call.1} parent=1 // pred_fallthru
      _
    // Predicated region
    $region26: #{tpu_custom_call.1} parent=1 // pred_check
      _
    $region27: #{tpu_custom_call.1} parent=1 // pred_check_branch
      %441 = sbr.rel (0) target = $region29
    $region28: #{tpu_custom_call.1} parent=1 // pred_region
      %443 = dma.done [#allocation4], 16
    $region29: #{tpu_custom_call.1} parent=1 // pred_fallthru
      _
    %444 = vsyncpa [#allocation4], 1

</llo_original>
